<compile_context>
chip_gen: v7x
topology: tpu7x:2x2x1
jax: 0.10.0
libtpu: 0.0.40
codegen_flags: <defaults>
</compile_context>

<pallas_src>
import math
import functools

import jax
import jax.numpy as jnp
from jax import lax
from jax.experimental import pallas as pl
from jax.experimental.pallas import tpu as pltpu

_LANE = 128


def _softmax_rows(m):
    """Numerically stable softmax along the last axis; divide on the EUP."""
    m_max = jnp.max(m, axis=-1, keepdims=True)
    e = jnp.exp(m - m_max)
    return e * pl.reciprocal(jnp.sum(e, axis=-1, keepdims=True), approx=True)


def _softmax_cols(m):
    """softmax along axis 0 (== softmax(m.T, dim=1) without transposing)."""
    m_max = jnp.max(m, axis=0, keepdims=True)
    e = jnp.exp(m - m_max)
    return e * pl.reciprocal(jnp.sum(e, axis=0, keepdims=True), approx=True)


def _dot_t(a, b):
    """a.T @ b without materializing the transpose (contract axis 0 of both)."""
    return lax.dot_general(a, b, (((0,), (0,)), ((), ())),
                           preferred_element_type=jnp.float32)


def _hgat_kernel(x_ref, adj_ref, w_ref, w3_ref, node_ref, edge_ref,
                 *, reassociate):
    x = x_ref[0]        # [N, Fin]  f32
    adj = adj_ref[0]    # [N, E]    f32
    w = w_ref[...]      # [Fin, Fp] f32 (zero-padded out-features)
    w3 = w3_ref[...]    # [Fp, Fp]  f32 (zero-padded)

    # adjt = softmax(adj.T, dim=1) kept un-transposed (softmax over nodes, per edge)
    col_p = _softmax_cols(adj)      # [N, E], each column sums to 1
    # adj_sm = softmax(adj, dim=1)  (softmax over edges, per node)
    row_p = _softmax_rows(adj)      # [N, E], each row sums to 1

    bf = jnp.bfloat16
    x_bf = x.astype(bf)
    w_bf = w.astype(bf)
    w3_bf = w3.astype(bf)
    col_p_bf = col_p.astype(bf)
    row_p_bf = row_p.astype(bf)

    if reassociate:
        # E < N: (adjt_sm @ x) @ w costs fewer FLOPs than adjt_sm @ (x @ w)
        ex = _dot_t(col_p_bf, x_bf)                                     # [E, Fin]
        edge = jnp.dot(ex.astype(bf), w_bf,
                       preferred_element_type=jnp.float32)              # [E, Fp]
    else:
        xw = jnp.dot(x_bf, w_bf, preferred_element_type=jnp.float32)    # [N, Fp]
        edge = _dot_t(col_p_bf, xw.astype(bf))                          # [E, Fp]
    # edge = relu(dropout(adjt @ x))  (dropout == identity in eval mode)
    edge = jnp.maximum(edge, 0.0)

    # e1 = edge @ weight3
    e1 = jnp.dot(edge.astype(bf), w3_bf,
                 preferred_element_type=jnp.float32)                     # [E, Fp]

    # node = relu(dropout(adj_sm @ e1))   (concat=True -> relu)
    node = jnp.dot(row_p_bf, e1.astype(bf),
                   preferred_element_type=jnp.float32)                   # [N, Fp]
    node = jnp.maximum(node, 0.0)

    # edge = relu(dropout(adjt @ node))   (edge=True branch)
    edge_out = _dot_t(col_p_bf, node.astype(bf))                         # [E, Fp]
    edge_out = jnp.maximum(edge_out, 0.0)

    node_ref[0] = node.astype(node_ref.dtype)
    edge_ref[0] = edge_out.astype(edge_ref.dtype)


def hgat_layer_forward(x, adj, root_emb, weight, weight3):
    """Pallas HGATLayer forward (transfer=True, bias=False, concat=True,
    edge=True, dropout in eval mode).

    Accepts batched inputs x:[B,N,Fin], adj:[B,N,E] (or unbatched 2-D) and
    returns (node [B,N,Fout], edge [B,E,Fout]).  root_emb is unused, as in the
    PyTorch forward.
    """
    del root_emb  # unused by the PyTorch forward as well
    squeeze = (x.ndim == 2)
    if squeeze:
        x = x[None]
        adj = adj[None]

    B, N, Fin = x.shape
    E = adj.shape[-1]
    Fout = weight.shape[1]

    # Lane-dense outputs: pad out-features to a multiple of 128 (zeros pass
    # cleanly through all matmuls / relus and are sliced off at the end).
    Fp = max(_LANE, ((Fout + _LANE - 1) // _LANE) * _LANE)
    w_p = jnp.zeros((Fin, Fp), jnp.float32).at[:, :Fout].set(
        weight.astype(jnp.float32))
    w3_p = jnp.zeros((Fp, Fp), jnp.float32).at[:Fout, :Fout].set(
        weight3.astype(jnp.float32))

    reassociate = E < N  # static (shape-dependent) matmul reassociation

    if reassociate:
        flops_g = 2 * (N * E * Fin + E * Fin * Fp + E * Fp * Fp + 2 * N * E * Fp)
    else:
        flops_g = 2 * (N * Fin * Fp + 3 * N * E * Fp + E * Fp * Fp)
    cost = pl.CostEstimate(
        flops=B * flops_g,
        transcendentals=B * 2 * N * E,
        bytes_accessed=4 * (B * (N * Fin + N * E + N * Fp + E * Fp)
                            + Fin * Fp + Fp * Fp),
    )

    kernel = functools.partial(_hgat_kernel, reassociate=reassociate)

    node_p, edge_p = pl.pallas_call(
        kernel,
        out_shape=(
            jax.ShapeDtypeStruct((B, N, Fp), jnp.float32),
            jax.ShapeDtypeStruct((B, E, Fp), jnp.float32),
        ),
        grid_spec=pltpu.PrefetchScalarGridSpec(
            num_scalar_prefetch=0,
            grid=(B,),
            in_specs=[
                pl.BlockSpec((1, N, Fin), lambda b: (b, 0, 0)),
                pl.BlockSpec((1, N, E), lambda b: (b, 0, 0)),
                pl.BlockSpec((Fin, Fp), lambda b: (0, 0)),
                pl.BlockSpec((Fp, Fp), lambda b: (0, 0)),
            ],
            out_specs=(
                pl.BlockSpec((1, N, Fp), lambda b: (b, 0, 0)),
                pl.BlockSpec((1, E, Fp), lambda b: (b, 0, 0)),
            ),
        ),
        compiler_params=pltpu.CompilerParams(
            dimension_semantics=("parallel",),
            vmem_limit_bytes=32 * 1024 * 1024,
        ),
        cost_estimate=cost,
    )(x.astype(jnp.float32), adj.astype(jnp.float32), w_p, w3_p)

    node = node_p[:, :, :Fout]
    edge = edge_p[:, :, :Fout]
    if squeeze:
        node, edge = node[0], edge[0]
    return node, edge


def _reference_single(x, adj, weight, weight3):
    """Pure-JAX reference mirroring the PyTorch forward (eval mode)."""
    xw = x @ weight
    adjt = jax.nn.softmax(adj.T, axis=1)
    edge = jax.nn.relu(adjt @ xw)
    e1 = edge @ weight3
    adj_sm = jax.nn.softmax(adj, axis=1)
    node = jax.nn.relu(adj_sm @ e1)
    edge_out = jax.nn.relu(adjt @ node)
    return node, edge_out


if __name__ == "__main__":
    # Small, module-consistent shapes; batch of graphs to amortize call overhead.
    B = 8
    n_nodes = 16
    n_edges = 8
    in_features = 32
    out_features = 32

    key = jax.random.PRNGKey(0)
    kx, kadj, kroot, kw, kw3 = jax.random.split(key, 5)

    x = jax.random.normal(kx, (B, n_nodes, in_features), dtype=jnp.float32)
    adj = jax.random.uniform(kadj, (B, n_nodes, n_edges), dtype=jnp.float32)
    root_emb = jax.random.normal(kroot, (1, out_features), dtype=jnp.float32)

    # Deterministic parameter init: uniform(-stdv, stdv), stdv = 1/sqrt(out)
    stdv = 1.0 / math.sqrt(out_features)
    weight = jax.random.uniform(
        kw, (in_features, out_features), minval=-stdv, maxval=stdv,
        dtype=jnp.float32)
    weight3 = jax.random.uniform(
        kw3, (out_features, out_features), minval=-stdv, maxval=stdv,
        dtype=jnp.float32)

    fwd = jax.jit(hgat_layer_forward)
    node, edge = fwd(x, adj, root_emb, weight, weight3)
    jax.block_until_ready((node, edge))

    # Correctness vs pure-JAX f32 reference (relaxed tolerance: bf16 MXU feeds
    # + EUP approx reciprocal).
    node_ref, edge_ref = jax.vmap(
        _reference_single, in_axes=(0, 0, None, None))(x, adj, weight, weight3)
    assert node.shape == (B, n_nodes, out_features)
    assert edge.shape == (B, n_edges, out_features)
    assert jnp.allclose(node, node_ref, atol=5e-2, rtol=5e-2), \
        float(jnp.max(jnp.abs(node - node_ref)))
    assert jnp.allclose(edge, edge_ref, atol=5e-2, rtol=5e-2), \
        float(jnp.max(jnp.abs(edge - edge_ref)))

    # Unbatched 2-D path (single graph) also works.
    n1, e1 = fwd(x[0], adj[0], root_emb, weight, weight3)
    jax.block_until_ready((n1, e1))
    assert jnp.allclose(n1, node_ref[0], atol=5e-2, rtol=5e-2)
    assert jnp.allclose(e1, edge_ref[0], atol=5e-2, rtol=5e-2)

    print("KERNEL_OK")
</pallas_src>

<mosaic_0001>
module attributes {stable_mosaic.version = 11 : i64} {
  func.func @_hgat_kernel(%arg0: i32, %arg1: memref<1x16x32xf32, #tpu.memory_space<vmem>>, %arg2: memref<1x16x8xf32, #tpu.memory_space<vmem>>, %arg3: memref<32x128xf32, #tpu.memory_space<vmem>>, %arg4: memref<128x128xf32, #tpu.memory_space<vmem>>, %arg5: memref<1x16x128xf32, #tpu.memory_space<vmem>>, %arg6: memref<1x8x128xf32, #tpu.memory_space<vmem>>) attributes {dimension_semantics = [#tpu.dimension_semantics<parallel>], iteration_bounds = array<i64: 8>, scalar_prefetch = 0 : i64, scratch_operands = 0 : i64, tpu.core_type = #tpu.core_type<tc>, window_params = [{transform_indices = @transform_0, window_bounds = array<i64: 1, 16, 32>}, {transform_indices = @transform_1, window_bounds = array<i64: 1, 16, 8>}, {pipeline_mode = #tpu.pipeline_mode<synchronous>, transform_indices = @transform_2, window_bounds = array<i64: 32, 128>}, {pipeline_mode = #tpu.pipeline_mode<synchronous>, transform_indices = @transform_3, window_bounds = array<i64: 128, 128>}, {transform_indices = @transform_4, window_bounds = array<i64: 1, 16, 128>}, {transform_indices = @transform_5, window_bounds = array<i64: 1, 8, 128>}]} {
    %c0 = arith.constant 0 : index
    %c0_0 = arith.constant 0 : index
    %c0_1 = arith.constant 0 : index
    %0 = vector.load %arg1[%c0, %c0_0, %c0_1] : memref<1x16x32xf32, #tpu.memory_space<vmem>>, vector<1x16x32xf32>
    %1 = vector.shape_cast %0 : vector<1x16x32xf32> to vector<16x32xf32>
    %c0_2 = arith.constant 0 : index
    %c0_3 = arith.constant 0 : index
    %c0_4 = arith.constant 0 : index
    %2 = vector.load %arg2[%c0_2, %c0_3, %c0_4] : memref<1x16x8xf32, #tpu.memory_space<vmem>>, vector<1x16x8xf32>
    %3 = vector.shape_cast %2 : vector<1x16x8xf32> to vector<16x8xf32>
    %c0_5 = arith.constant 0 : index
    %c0_6 = arith.constant 0 : index
    %4 = vector.load %arg3[%c0_5, %c0_6] : memref<32x128xf32, #tpu.memory_space<vmem>>, vector<32x128xf32>
    %c0_7 = arith.constant 0 : index
    %c0_8 = arith.constant 0 : index
    %5 = vector.load %arg4[%c0_7, %c0_8] : memref<128x128xf32, #tpu.memory_space<vmem>>, vector<128x128xf32>
    %cst = arith.constant dense<0xFF800000> : vector<8xf32>
    %6 = vector.multi_reduction <maximumf>, %3, %cst [0] : vector<16x8xf32> to vector<8xf32>
    %7 = vector.shape_cast %6 : vector<8xf32> to vector<1x8xf32>
    %8 = vector.broadcast %7 : vector<1x8xf32> to vector<16x8xf32>
    %9 = arith.subf %3, %8 : vector<16x8xf32>
    %10 = math.exp %9 : vector<16x8xf32>
    %cst_9 = arith.constant dense<0.000000e+00> : vector<8xf32>
    %11 = vector.multi_reduction <add>, %10, %cst_9 [0] : vector<16x8xf32> to vector<8xf32>
    %12 = vector.shape_cast %11 : vector<8xf32> to vector<1x8xf32>
    %13 = tpu.reciprocal %12 {approx = true} : vector<1x8xf32> -> vector<1x8xf32>
    %14 = vector.broadcast %13 : vector<1x8xf32> to vector<16x8xf32>
    %15 = arith.mulf %10, %14 : vector<16x8xf32>
    %cst_10 = arith.constant dense<0xFF800000> : vector<16xf32>
    %16 = vector.multi_reduction <maximumf>, %3, %cst_10 [1] : vector<16x8xf32> to vector<16xf32>
    %17 = vector.shape_cast %16 : vector<16xf32> to vector<16x1xf32>
    %18 = vector.broadcast %17 : vector<16x1xf32> to vector<16x8xf32>
    %19 = arith.subf %3, %18 : vector<16x8xf32>
    %20 = math.exp %19 : vector<16x8xf32>
    %cst_11 = arith.constant dense<0.000000e+00> : vector<16xf32>
    %21 = vector.multi_reduction <add>, %20, %cst_11 [1] : vector<16x8xf32> to vector<16xf32>
    %22 = vector.shape_cast %21 : vector<16xf32> to vector<16x1xf32>
    %23 = tpu.reciprocal %22 {approx = true} : vector<16x1xf32> -> vector<16x1xf32>
    %24 = vector.broadcast %23 : vector<16x1xf32> to vector<16x8xf32>
    %25 = arith.mulf %20, %24 : vector<16x8xf32>
    %26 = arith.truncf %1 : vector<16x32xf32> to vector<16x32xbf16>
    %27 = arith.truncf %4 : vector<32x128xf32> to vector<32x128xbf16>
    %28 = arith.truncf %5 : vector<128x128xf32> to vector<128x128xbf16>
    %29 = arith.truncf %15 : vector<16x8xf32> to vector<16x8xbf16>
    %30 = arith.truncf %25 : vector<16x8xf32> to vector<16x8xbf16>
    %cst_12 = arith.constant dense<0.000000e+00> : vector<8x32xf32>
    %31 = tpu.matmul %29, %26, %cst_12 {dimension_numbers = #tpu.dot_dimension_numbers<[0], [0], [1], [1], [0, 1, 1, 1], [], []>} : vector<16x8xbf16>, vector<16x32xbf16>, vector<8x32xf32> -> vector<8x32xf32>
    %32 = arith.truncf %31 : vector<8x32xf32> to vector<8x32xbf16>
    %cst_13 = arith.constant dense<0.000000e+00> : vector<8x128xf32>
    %33 = tpu.matmul %32, %27, %cst_13 {dimension_numbers = #tpu.dot_dimension_numbers<[1], [0], [0], [1], [0, 0, 1, 1], [], []>} : vector<8x32xbf16>, vector<32x128xbf16>, vector<8x128xf32> -> vector<8x128xf32>
    %cst_14 = arith.constant 0.000000e+00 : f32
    %34 = vector.broadcast %cst_14 : f32 to vector<8x128xf32>
    %35 = arith.maximumf %33, %34 : vector<8x128xf32>
    %36 = arith.truncf %35 : vector<8x128xf32> to vector<8x128xbf16>
    %cst_15 = arith.constant dense<0.000000e+00> : vector<8x128xf32>
    %37 = tpu.matmul %36, %28, %cst_15 {dimension_numbers = #tpu.dot_dimension_numbers<[1], [0], [0], [1], [0, 0, 1, 1], [], []>} : vector<8x128xbf16>, vector<128x128xbf16>, vector<8x128xf32> -> vector<8x128xf32>
    %38 = arith.truncf %37 : vector<8x128xf32> to vector<8x128xbf16>
    %cst_16 = arith.constant dense<0.000000e+00> : vector<16x128xf32>
    %39 = tpu.matmul %30, %38, %cst_16 {dimension_numbers = #tpu.dot_dimension_numbers<[1], [0], [0], [1], [0, 0, 1, 1], [], []>} : vector<16x8xbf16>, vector<8x128xbf16>, vector<16x128xf32> -> vector<16x128xf32>
    %cst_17 = arith.constant 0.000000e+00 : f32
    %40 = vector.broadcast %cst_17 : f32 to vector<16x128xf32>
    %41 = arith.maximumf %39, %40 : vector<16x128xf32>
    %42 = arith.truncf %41 : vector<16x128xf32> to vector<16x128xbf16>
    %cst_18 = arith.constant dense<0.000000e+00> : vector<8x128xf32>
    %43 = tpu.matmul %29, %42, %cst_18 {dimension_numbers = #tpu.dot_dimension_numbers<[0], [0], [1], [1], [0, 1, 1, 1], [], []>} : vector<16x8xbf16>, vector<16x128xbf16>, vector<8x128xf32> -> vector<8x128xf32>
    %cst_19 = arith.constant 0.000000e+00 : f32
    %44 = vector.broadcast %cst_19 : f32 to vector<8x128xf32>
    %45 = arith.maximumf %43, %44 : vector<8x128xf32>
    %c0_20 = arith.constant 0 : index
    %c0_21 = arith.constant 0 : index
    %c0_22 = arith.constant 0 : index
    %46 = vector.load %arg5[%c0_20, %c0_21, %c0_22] : memref<1x16x128xf32, #tpu.memory_space<vmem>>, vector<1x16x128xf32>
    %47 = vector.shape_cast %46 : vector<1x16x128xf32> to vector<16x128xf32>
    %48 = vector.shape_cast %41 : vector<16x128xf32> to vector<1x16x128xf32>
    tpu.vector_store %arg5[%c0_20, %c0_21, %c0_22], %48 {strides = array<i32>} : memref<1x16x128xf32, #tpu.memory_space<vmem>>, vector<1x16x128xf32>,
    %c0_23 = arith.constant 0 : index
    %c0_24 = arith.constant 0 : index
    %c0_25 = arith.constant 0 : index
    %49 = vector.load %arg6[%c0_23, %c0_24, %c0_25] : memref<1x8x128xf32, #tpu.memory_space<vmem>>, vector<1x8x128xf32>
    %50 = vector.shape_cast %49 : vector<1x8x128xf32> to vector<8x128xf32>
    %51 = vector.shape_cast %45 : vector<8x128xf32> to vector<1x8x128xf32>
    tpu.vector_store %arg6[%c0_23, %c0_24, %c0_25], %51 {strides = array<i32>} : memref<1x8x128xf32, #tpu.memory_space<vmem>>, vector<1x8x128xf32>,
    return
  }
  func.func @transform_0(%arg0: i32) -> (i32, i32, i32) {
    %c0_i32 = arith.constant 0 : i32
    %c0_i32_0 = arith.constant 0 : i32
    %c0_i32_1 = arith.constant 0 : i32
    return %arg0, %c0_i32, %c0_i32_0 : i32, i32, i32
  }
  func.func @transform_1(%arg0: i32) -> (i32, i32, i32) {
    %c0_i32 = arith.constant 0 : i32
    %c0_i32_0 = arith.constant 0 : i32
    %c0_i32_1 = arith.constant 0 : i32
    return %arg0, %c0_i32, %c0_i32_0 : i32, i32, i32
  }
  func.func @transform_2(%arg0: i32) -> (i32, i32) {
    %c0_i32 = arith.constant 0 : i32
    %c0_i32_0 = arith.constant 0 : i32
    %c0_i32_1 = arith.constant 0 : i32
    return %c0_i32, %c0_i32_0 : i32, i32
  }
  func.func @transform_3(%arg0: i32) -> (i32, i32) {
    %c0_i32 = arith.constant 0 : i32
    %c0_i32_0 = arith.constant 0 : i32
    %c0_i32_1 = arith.constant 0 : i32
    return %c0_i32, %c0_i32_0 : i32, i32
  }
  func.func @transform_4(%arg0: i32) -> (i32, i32, i32) {
    %c0_i32 = arith.constant 0 : i32
    %c0_i32_0 = arith.constant 0 : i32
    %c0_i32_1 = arith.constant 0 : i32
    return %arg0, %c0_i32, %c0_i32_0 : i32, i32, i32
  }
  func.func @transform_5(%arg0: i32) -> (i32, i32, i32) {
    %c0_i32 = arith.constant 0 : i32
    %c0_i32_0 = arith.constant 0 : i32
    %c0_i32_1 = arith.constant 0 : i32
    return %arg0, %c0_i32, %c0_i32_0 : i32, i32, i32
  }
}

</mosaic_0001>

<llo_original>
// kernel: hgat_layer_forward.1
$region0: #{hgat_layer_forward.1}
  #allocation0 [shape = 'u32[]', space=smem, size = 0x4, offset = 0x4, fixed_abs, tag = 'smem constant byte address 0x4 - core index']
  #allocation1 [shape = 'u32[144,128]{1,0:T(1,128)}', space=vmem, size = 0x12000, scoped, tag = 'internal scratch']
  %s0 = inlined_call_operand.vmem [shape: f32[8,16,32], index: 0, kind: input, shape index: {}]
  %s1 = inlined_call_operand.vmem [shape: f32[8,16,8], index: 1, kind: input, shape index: {}]
  %s2 = inlined_call_operand.vmem [shape: f32[32,128], index: 2, kind: input, shape index: {}]
  %s3 = inlined_call_operand.vmem [shape: f32[128,128], index: 3, kind: input, shape index: {}]
  %s4 = inlined_call_operand.hbm [shape: f32[8,16,128], index: 4, kind: output, shape index: {0}]
  %s5 = inlined_call_operand.hbm [shape: f32[8,8,128], index: 5, kind: output, shape index: {1}]
  %6 = xla_tuple %s4, %s5
  %s7 = sld [smem:[#allocation0]]
  $region57: #{hgat_layer_forward.1} parent=0
    _
  %s9 = ssub.s32 1, %s7
  %s10 = scalar_select 0, %s9, %s7
  $region1: #{hgat_layer_forward.1} parent=0
    #allocation2 [shape = 'u8[16384]{0}', space=vmem, size = 0x4000, scoped, tag = 'output window, operand 0']
    #allocation3 [shape = 's32[2]{0}', space=sflag, size = 0x8, scoped, tag = 'scoped memory for hgat_layer_forward.1']
    #allocation4 [shape = 'u8[8192]{0}', space=vmem, size = 0x2000, scoped, tag = 'output window, operand 1']
    #allocation5 [shape = 's32[2]{0}', space=sflag, size = 0x8, scoped, tag = 'scoped memory for hgat_layer_forward.1']
    %11 = vsyncpa [#allocation3], 0
    %s12 = scalar_lea.sflag [#allocation3], 1
    %13 = vsyncpa %s12, 0
    %14 = vsyncpa [#allocation5], 0
    %s15 = scalar_lea.sflag [#allocation5], 1
    %16 = vsyncpa %s15, 0
    loop: start=0, step=1, limit=10
    $region2: #{hgat_layer_forward.1} parent=1 // loop_pre_header
      _
    $region3: #{hgat_layer_forward.1} parent=1 // loop_header
      %s18 = sphi 0, %s22
      %p19 = scmp.ge.s32.totalorder %s18, 10
      %s28 = sphi 0, %s30
      %s31 = sphi 0, %s28
      %s32 = sphi 0, %s31
      %s48 = sphi 0, %s32
      %s54 = sphi 0, %s56
      %s57 = sphi 0, %s54
      %s58 = sphi 0, %s57
      %s74 = sphi 0, %s58
      %s78 = sphi 0, %s78
      %s80 = sphi 0, %s78
      %s81 = sphi 0, %s80
      %s95 = sphi 0, %s81
      %s99 = sphi 0, %s99
      %s101 = sphi 0, %s99
      %s102 = sphi 0, %s101
      %s116 = sphi 0, %s102
      %s122 = sphi 0, %s124
      %s125 = sphi 0, %s122
      %s126 = sphi 0, %s125
      %s142 = sphi 0, %s126
      %s148 = sphi 0, %s150
      %s151 = sphi 0, %s148
      %s152 = sphi 0, %s151
      %s168 = sphi 0, %s152
    $region4: #{hgat_layer_forward.1} parent=1 // loop_header_branch
      %21 = sbr.rel (%p19) target = $region8
    $region5: #{hgat_layer_forward.1} parent=1 // loop_body
      %s23 = ssub.s32 %s18, 1
      %s24 = ssub.s32 %s18, 2
      %s25 = sadd.s32 %s18, 1
      %s26 = ssub.s32 %s18, %s25
      %p27 = scmp.eq.s32.totalorder %s26, 0
      %s29 = sadd.s32 %s28, 1
      %s30 = scalar_select %p27, %s28, %s29
      %p33 = pneg %p27
      %p34 = scmp.eq.s32.totalorder %s18, 7
      %p35 = por %p33, %p34
      %p36 = scmp.ne.s32.totalorder %s28, %s31
      %p37 = scmp.eq.s32.totalorder %s18, 0
      %p38 = por %p36, %p37
      %p39 = scmp.ne.s32.totalorder %s28, %s31
      %p40 = scmp.eq.s32.totalorder %s23, 7
      %p41 = por %p39, %p40
      %p42 = scmp.ne.s32.totalorder %s31, %s32
      %p43 = scmp.eq.s32.totalorder %s23, 0
      %p44 = por %p42, %p43
      %p45 = scmp.ne.s32.totalorder %s31, %s32
      %p46 = scmp.eq.s32.totalorder %s24, 7
      %p47 = por %p45, %p46
      %p49 = scmp.ne.s32.totalorder %s32, %s48
      %p50 = scmp.eq.s32.totalorder %s24, 0
      %p51 = por %p49, %p50
      %s52 = ssub.s32 %s18, %s25
      %p53 = scmp.eq.s32.totalorder %s52, 0
      %s55 = sadd.s32 %s54, 1
      %s56 = scalar_select %p53, %s54, %s55
      %p59 = pneg %p53
      %p60 = scmp.eq.s32.totalorder %s18, 7
      %p61 = por %p59, %p60
      %p62 = scmp.ne.s32.totalorder %s54, %s57
      %p63 = scmp.eq.s32.totalorder %s18, 0
      %p64 = por %p62, %p63
      %p65 = scmp.ne.s32.totalorder %s54, %s57
      %p66 = scmp.eq.s32.totalorder %s23, 7
      %p67 = por %p65, %p66
      %p68 = scmp.ne.s32.totalorder %s57, %s58
      %p69 = scmp.eq.s32.totalorder %s23, 0
      %p70 = por %p68, %p69
      %p71 = scmp.ne.s32.totalorder %s57, %s58
      %p72 = scmp.eq.s32.totalorder %s24, 7
      %p73 = por %p71, %p72
      %p75 = scmp.ne.s32.totalorder %s58, %s74
      %p76 = scmp.eq.s32.totalorder %s24, 0
      %p77 = por %p75, %p76
      %s79 = sadd.s32 %s78, 1
      %p82 = scmp.eq.s32.totalorder %s18, 7
      %p83 = scmp.ne.s32.totalorder %s78, %s80
      %p84 = scmp.eq.s32.totalorder %s18, 0
      %p85 = por %p83, %p84
      %p86 = scmp.ne.s32.totalorder %s78, %s80
      %p87 = scmp.eq.s32.totalorder %s23, 7
      %p88 = por %p86, %p87
      %p89 = scmp.ne.s32.totalorder %s80, %s81
      %p90 = scmp.eq.s32.totalorder %s23, 0
      %p91 = por %p89, %p90
      %p92 = scmp.ne.s32.totalorder %s80, %s81
      %p93 = scmp.eq.s32.totalorder %s24, 7
      %p94 = por %p92, %p93
      %p96 = scmp.ne.s32.totalorder %s81, %s95
      %p97 = scmp.eq.s32.totalorder %s24, 0
      %p98 = por %p96, %p97
      %s100 = sadd.s32 %s99, 1
      %p103 = scmp.eq.s32.totalorder %s18, 7
      %p104 = scmp.ne.s32.totalorder %s99, %s101
      %p105 = scmp.eq.s32.totalorder %s18, 0
      %p106 = por %p104, %p105
      %p107 = scmp.ne.s32.totalorder %s99, %s101
      %p108 = scmp.eq.s32.totalorder %s23, 7
      %p109 = por %p107, %p108
      %p110 = scmp.ne.s32.totalorder %s101, %s102
      %p111 = scmp.eq.s32.totalorder %s23, 0
      %p112 = por %p110, %p111
      %p113 = scmp.ne.s32.totalorder %s101, %s102
      %p114 = scmp.eq.s32.totalorder %s24, 7
      %p115 = por %p113, %p114
      %p117 = scmp.ne.s32.totalorder %s102, %s116
      %p118 = scmp.eq.s32.totalorder %s24, 0
      %p119 = por %p117, %p118
      %s120 = ssub.s32 %s18, %s25
      %p121 = scmp.eq.s32.totalorder %s120, 0
      %s123 = sadd.s32 %s122, 1
      %s124 = scalar_select %p121, %s122, %s123
      %p127 = pneg %p121
      %p128 = scmp.eq.s32.totalorder %s18, 7
      %p129 = por %p127, %p128
      %p130 = scmp.ne.s32.totalorder %s122, %s125
      %p131 = scmp.eq.s32.totalorder %s18, 0
      %p132 = por %p130, %p131
      %p133 = scmp.ne.s32.totalorder %s122, %s125
      %p134 = scmp.eq.s32.totalorder %s23, 7
      %p135 = por %p133, %p134
      %p136 = scmp.ne.s32.totalorder %s125, %s126
      %p137 = scmp.eq.s32.totalorder %s23, 0
      %p138 = por %p136, %p137
      %p139 = scmp.ne.s32.totalorder %s125, %s126
      %p140 = scmp.eq.s32.totalorder %s24, 7
      %p141 = por %p139, %p140
      %p143 = scmp.ne.s32.totalorder %s126, %s142
      %p144 = scmp.eq.s32.totalorder %s24, 0
      %p145 = por %p143, %p144
      %s146 = ssub.s32 %s18, %s25
      %p147 = scmp.eq.s32.totalorder %s146, 0
      %s149 = sadd.s32 %s148, 1
      %s150 = scalar_select %p147, %s148, %s149
      %p153 = pneg %p147
      %p154 = scmp.eq.s32.totalorder %s18, 7
      %p155 = por %p153, %p154
      %p156 = scmp.ne.s32.totalorder %s148, %s151
      %p157 = scmp.eq.s32.totalorder %s18, 0
      %p158 = por %p156, %p157
      %p159 = scmp.ne.s32.totalorder %s148, %s151
      %p160 = scmp.eq.s32.totalorder %s23, 7
      %p161 = por %p159, %p160
      %p162 = scmp.ne.s32.totalorder %s151, %s152
      %p163 = scmp.eq.s32.totalorder %s23, 0
      %p164 = por %p162, %p163
      %p165 = scmp.ne.s32.totalorder %s151, %s152
      %p166 = scmp.eq.s32.totalorder %s24, 7
      %p167 = por %p165, %p166
      %p169 = scmp.ne.s32.totalorder %s152, %s168
      %p170 = scmp.eq.s32.totalorder %s24, 0
      %p171 = por %p169, %p170
      %p172 = scmp.le.s32.totalorder 1, %s18
      %p173 = scmp.lt.s32.totalorder %s18, 9
      %p174 = pnand %p172, %p173
      %p175 = pneg %p174
      // Predicated region
      $region9: #{hgat_layer_forward.1} parent=5 // pred_check
        _
      $region10: #{hgat_layer_forward.1} parent=5 // pred_check_branch
        %177 = sbr.rel (%p174) target = $region12
      $region11: #{hgat_layer_forward.1} parent=5 // pred_region
        %s178 = ssub.s32 %s18, 1
        // Predicated region
        $region13: #{hgat_layer_forward.1} parent=11 // pred_check
          %p179 = pneg %p91
        $region14: #{hgat_layer_forward.1} parent=11 // pred_check_branch
          %181 = sbr.rel (%p179) target = $region16
        $region15: #{hgat_layer_forward.1} parent=11 // pred_region
          _
        $region16: #{hgat_layer_forward.1} parent=11 // pred_fallthru
          _
        // Predicated region
        $region17: #{hgat_layer_forward.1} parent=11 // pred_check
          %p182 = pneg %p112
        $region18: #{hgat_layer_forward.1} parent=11 // pred_check_branch
          %184 = sbr.rel (%p182) target = $region20
        $region19: #{hgat_layer_forward.1} parent=11 // pred_region
          _
        $region20: #{hgat_layer_forward.1} parent=11 // pred_fallthru
          _
      $region12: #{hgat_layer_forward.1} parent=5 // pred_fallthru
        _
      %p185 = scmp.lt.s32.totalorder %s18, 8
      // Predicated region
      $region21: #{hgat_layer_forward.1} parent=5 // pred_check
        %p186 = pneg %p185
      $region22: #{hgat_layer_forward.1} parent=5 // pred_check_branch
        %188 = sbr.rel (%p186) target = $region24
      $region23: #{hgat_layer_forward.1} parent=5 // pred_region
        // Predicated region
        $region25: #{hgat_layer_forward.1} parent=23 // pred_check
          %p189 = pneg %p38
        $region26: #{hgat_layer_forward.1} parent=23 // pred_check_branch
          %191 = sbr.rel (%p189) target = $region28
        $region27: #{hgat_layer_forward.1} parent=23 // pred_region
          %p192 = scmp.lt.s32.totalorder %s18, 7
          %s193 = scalar_select %p192, %s18, 7
          %s194 = smul.addr %s193, 2
          %s195 = smul.addr %s194, 8
          %s196 = scalar_lea.vmem %s0, %s195
        $region28: #{hgat_layer_forward.1} parent=23 // pred_fallthru
          _
        // Predicated region
        $region29: #{hgat_layer_forward.1} parent=23 // pred_check
          %p197 = pneg %p64
        $region30: #{hgat_layer_forward.1} parent=23 // pred_check_branch
          %199 = sbr.rel (%p197) target = $region32
        $region31: #{hgat_layer_forward.1} parent=23 // pred_region
          %p200 = scmp.lt.s32.totalorder %s18, 7
          %s201 = scalar_select %p200, %s18, 7
          %s202 = smul.addr %s201, 2
          %s203 = smul.addr %s202, 8
          %s204 = scalar_lea.vmem %s1, %s203
        $region32: #{hgat_layer_forward.1} parent=23 // pred_fallthru
          _
      $region24: #{hgat_layer_forward.1} parent=5 // pred_fallthru
        _
      %p205 = scmp.le.s32.totalorder 1, %s18
      %p206 = scmp.lt.s32.totalorder %s18, 9
      %p207 = pnand %p205, %p206
      %p208 = pneg %p207
      // Predicated region
      $region33: #{hgat_layer_forward.1} parent=5 // pred_check
        _
      $region34: #{hgat_layer_forward.1} parent=5 // pred_check_branch
        %210 = sbr.rel (%p207) target = $region36
      $region35: #{hgat_layer_forward.1} parent=5 // pred_region
        %s211 = ssub.s32 %s18, 1
        %p212 = scmp.lt.s32.totalorder %s23, 7
        %s213 = scalar_select %p212, %s23, 7
        %s214 = smul.addr %s213, 2
        %s215 = smul.addr %s214, 8
        %s216 = scalar_lea.vmem %s0, %s215
        %p217 = pneg %p44
        %p218 = pneg %p41
        %p219 = scmp.lt.s32.totalorder %s23, 7
        %s220 = scalar_select %p219, %s23, 7
        %s221 = smul.addr %s220, 2
        %s222 = smul.addr %s221, 8
        %s223 = scalar_lea.vmem %s1, %s222
        %p224 = pneg %p70
        %p225 = pneg %p67
        %p226 = pneg %p91
        %p227 = pneg %p88
        %p228 = pneg %p112
        %p229 = pneg %p109
        %p230 = pneg %p138
        %p231 = pneg %p135
        %s232 = sand.u32 %s125, 1
        %s233 = scalar_lea.sflag [#allocation3], %s232
        %s234 = sand.u32 %s125, 1
        %s235 = smul.addr %s234, 16
        %s236 = scalar_lea.vmem [#allocation2], %s235
        %p237 = pneg %p164
        %p238 = pneg %p161
        %s239 = sand.u32 %s151, 1
        %s240 = scalar_lea.sflag [#allocation5], %s239
        %s241 = sand.u32 %s151, 1
        %s242 = smul.addr %s241, 8
        %s243 = scalar_lea.vmem [#allocation4], %s242
        %p244 = scmp.lt.s32.totalorder %s23, 7
        %s245 = scalar_select %p244, %s23, 7
        %s246 = smul.addr %s245, 2
        %s247 = smul.addr %s246, 8
        %s248 = scalar_lea.vmem %s0, %s247
        %p249 = scmp.lt.s32.totalorder %s23, 7
        %s250 = scalar_select %p249, %s23, 7
        %s251 = smul.addr %s250, 2
        %s252 = smul.addr %s251, 8
        %s253 = scalar_lea.vmem %s1, %s252
        %v255 = vld [vmem:[%s248] sm:$0xff]
        %v256 = vld [vmem:[%s248 + $0x8] sm:$0xff]
        %v257 = vld [vmem:[%s253] sm:$0xff]
        %v258 = vld [vmem:[%s253 + $0x8] sm:$0xff]
        %v259 = vld [vmem:[%s2] sm:$0xff]
        %v260 = vld [vmem:[%s2 + $0x8] sm:$0xff]
        %v261 = vld [vmem:[%s2 + $0x10] sm:$0xff]
        %v262 = vld [vmem:[%s2 + $0x18] sm:$0xff]
        %v263 = vld [vmem:[%s3] sm:$0xff]
        %v264 = vld [vmem:[%s3 + $0x8] sm:$0xff]
        %v265 = vld [vmem:[%s3 + $0x10] sm:$0xff]
        %v266 = vld [vmem:[%s3 + $0x18] sm:$0xff]
        %v267 = vld [vmem:[%s3 + $0x20] sm:$0xff]
        %v268 = vld [vmem:[%s3 + $0x28] sm:$0xff]
        %v269 = vld [vmem:[%s3 + $0x30] sm:$0xff]
        %v270 = vld [vmem:[%s3 + $0x38] sm:$0xff]
        %v271 = vld [vmem:[%s3 + $0x40] sm:$0xff]
        %v272 = vld [vmem:[%s3 + $0x48] sm:$0xff]
        %v273 = vld [vmem:[%s3 + $0x50] sm:$0xff]
        %v274 = vld [vmem:[%s3 + $0x58] sm:$0xff]
        %v275 = vld [vmem:[%s3 + $0x60] sm:$0xff]
        %v276 = vld [vmem:[%s3 + $0x68] sm:$0xff]
        %v277 = vld [vmem:[%s3 + $0x70] sm:$0xff]
        %v278 = vld [vmem:[%s3 + $0x78] sm:$0xff]
        %vm279 = vcmask 64512
        %v280 = vsel %vm279, %v257, -inf
        %v281 = vsel %vm279, %v258, -inf
        %v282 = vmax.f32 %v280, %v281
        %v283 = vrot.slane %v282, 4
        %v284 = vmax.f32 %v282, %v283
        %v285 = vrot.slane %v284, 2
        %v286 = vmax.f32 %v284, %v285
        %v287 = vrot.slane %v286, 1
        %v288 = vmax.f32 %v286, %v287
        %v289 = vsub.f32 %v257, %v288
        %v290 = vsub.f32 %v258, %v288
        %v291 = vmul.f32 %v289, 1.442695
        %v292 = vpow.pop %v291
        %v293 = vmul.f32 %v290, 1.442695
        %v294 = vpow.pop %v293
        %v295 = vsel %vm279, %v292, 0.0
        %v296 = vsel %vm279, %v294, 0.0
        %v297 = vadd.f32 %v295, %v296
        %v298 = vrot.slane %v297, 4
        %v299 = vadd.f32 %v297, %v298
        %v300 = vrot.slane %v299, 2
        %v301 = vadd.f32 %v299, %v300
        %v302 = vrot.slane %v301, 1
        %v303 = vadd.f32 %v301, %v302
        %v304 = vrcp.pop %v303
        %v305 = vmul.f32 %v292, %v304
        %v306 = vmul.f32 %v294, %v304
        %307 = vmax.xlane.f32.xlu0 %v280
        %v308 = vpop.xlane.xlu0 %307
        %309 = vmax.xlane.f32.xlu0 %v281
        %v310 = vpop.xlane.xlu0 %309
        %v311 = vsub.f32 %v257, %v308
        %v312 = vsub.f32 %v258, %v310
        %v313 = vmul.f32 %v311, 1.442695
        %v314 = vpow.pop %v313
        %v315 = vmul.f32 %v312, 1.442695
        %v316 = vpow.pop %v315
        %v317 = vsel %vm279, %v314, 0.0
        %318 = vadd.xlane.f32.xlu0 %v317
        %v319 = vpop.xlane.xlu0 %318
        %v320 = vsel %vm279, %v316, 0.0
        %321 = vadd.xlane.f32.xlu0 %v320
        %v322 = vpop.xlane.xlu0 %321
        %v323 = vrcp.pop %v319
        %v324 = vrcp.pop %v322
        %v325 = vmul.f32 %v314, %v323
        %v326 = vmul.f32 %v316, %v324
        %v327 = vpack.c.bf16 %v256, %v255
        %v328 = vpack.c.bf16 %v260, %v259
        %v329 = vpack.c.bf16 %v262, %v261
        %v330 = vpack.c.bf16 %v264, %v263
        %v331 = vpack.c.bf16 %v266, %v265
        %v332 = vpack.c.bf16 %v268, %v267
        %v333 = vpack.c.bf16 %v270, %v269
        %v334 = vpack.c.bf16 %v272, %v271
        %v335 = vpack.c.bf16 %v274, %v273
        %v336 = vpack.c.bf16 %v276, %v275
        %v337 = vpack.c.bf16 %v278, %v277
        %v338 = vpack.c.bf16 %v306, %v305
        %v339 = vpack.c.bf16 %v326, %v325
        %340 = vxpose.xlu0.c.b16.start [1/8] %v338, 128
        %341 = vxpose.xlu0.c.b16.cont [2/8] 0, 128
        %342 = vxpose.xlu0.c.b16.cont [3/8] 0, 128
        %343 = vxpose.xlu0.c.b16.cont [4/8] 0, 128
        %344 = vxpose.xlu0.c.b16.cont [5/8] 0, 128
        %345 = vxpose.xlu0.c.b16.cont [6/8] 0, 128
        %346 = vxpose.xlu0.c.b16.cont [7/8] 0, 128
        %347 = vxpose.xlu0.c.b16.end [8/8] 0, 128
        %v348 = vpop.trf.xlu0
        %v349 = vpop.trf.xlu0
        %v350 = vpop.trf.xlu0
        %v351 = vpop.trf.xlu0
        %v352 = vpop.trf.xlu0
        %v353 = vpop.trf.xlu0
        %v354 = vpop.trf.xlu0
        %v355 = vpop.trf.xlu0
        %vm356 = vcmask 130048
        %v358 = vsel %vm356, %v348, 0
        %360 = vmatprep.subr.bf16.mxu0 0
        %361 = vmatpush1.bf16.msra.mxu0 %v327
        %362 = vmatprep.subr.bf16.mxu0 0
        %363 = vmatpush1.bf16.msra.mxu0 0
        %364 = vmatprep.subr.bf16.mxu0 0
        %365 = vmatpush1.bf16.msra.mxu0 0
        %366 = vmatprep.subr.bf16.mxu0 0
        %367 = vmatpush1.bf16.msra.mxu0 0
        %368 = vmatprep.subr.bf16.mxu0 0
        %369 = vmatpush1.bf16.msra.mxu0 0
        %370 = vmatprep.subr.bf16.mxu0 0
        %371 = vmatpush1.bf16.msra.mxu0 0
        %372 = vmatprep.subr.bf16.mxu0 0
        %373 = vmatpush1.bf16.msra.mxu0 0
        %374 = vmatprep.subr.bf16.mxu0 0
        %375 = vmatpush1.bf16.msra.mxu0 0
        %376 = vmatprep.subr.bf16.mxu0 0
        %377 = vmatpush1.bf16.msra.mxu0 0
        %378 = vmatprep.subr.bf16.mxu0 0
        %379 = vmatpush1.bf16.msra.mxu0 0
        %380 = vmatprep.subr.bf16.mxu0 0
        %381 = vmatpush1.bf16.msra.mxu0 0
        %382 = vmatprep.subr.bf16.mxu0 0
        %383 = vmatpush1.bf16.msra.mxu0 0
        %384 = vmatprep.subr.bf16.mxu0 0
        %385 = vmatpush1.bf16.msra.mxu0 0
        %386 = vmatprep.subr.bf16.mxu0 0
        %387 = vmatpush1.bf16.msra.mxu0 0
        %388 = vmatprep.subr.bf16.mxu0 0
        %389 = vmatpush1.bf16.msra.mxu0 0
        %390 = vmatprep.subr.bf16.mxu0 0
        %391 = vmatpush1.bf16.msra.mxu0 0
        %392 = vmatprep.mubr.bf16.mxu0 0
        %393 = vmatmul.mubr.bf16.gmra.mrb[0].mxu0 %v358
        %v394 = vpop.f32.mrb[0].mxu0
        %v395 = vadd.f32 0.0, %v394
        %v396 = vpop.f32.mrb[0].mxu0
        %v397 = vpop.f32.mrb[0].mxu0
        %v398 = vpop.f32.mrb[0].mxu0
        %399 = vdwg.mxu0
        %v400 = vpack.c.bf16 %v395, %v395
        %vm401 = vcmask 261120
        %v403 = vsel %vm401, %v400, 0
        %405 = vmatprep.subr.bf16.mxu0 0
        %406 = vmatpush1.bf16.msra.mxu0 %v328
        %407 = vmatprep.subr.bf16.mxu0 0
        %408 = vmatpush1.bf16.msra.mxu0 %v329
        %409 = vmatprep.subr.bf16.mxu0 0
        %410 = vmatpush1.bf16.msra.mxu0 0
        %411 = vmatprep.subr.bf16.mxu0 0
        %412 = vmatpush1.bf16.msra.mxu0 0
        %413 = vmatprep.subr.bf16.mxu0 0
        %414 = vmatpush1.bf16.msra.mxu0 0
        %415 = vmatprep.subr.bf16.mxu0 0
        %416 = vmatpush1.bf16.msra.mxu0 0
        %417 = vmatprep.subr.bf16.mxu0 0
        %418 = vmatpush1.bf16.msra.mxu0 0
        %419 = vmatprep.subr.bf16.mxu0 0
        %420 = vmatpush1.bf16.msra.mxu0 0
        %421 = vmatprep.subr.bf16.mxu0 0
        %422 = vmatpush1.bf16.msra.mxu0 0
        %423 = vmatprep.subr.bf16.mxu0 0
        %424 = vmatpush1.bf16.msra.mxu0 0
        %425 = vmatprep.subr.bf16.mxu0 0
        %426 = vmatpush1.bf16.msra.mxu0 0
        %427 = vmatprep.subr.bf16.mxu0 0
        %428 = vmatpush1.bf16.msra.mxu0 0
        %429 = vmatprep.subr.bf16.mxu0 0
        %430 = vmatpush1.bf16.msra.mxu0 0
        %431 = vmatprep.subr.bf16.mxu0 0
        %432 = vmatpush1.bf16.msra.mxu0 0
        %433 = vmatprep.subr.bf16.mxu0 0
        %434 = vmatpush1.bf16.msra.mxu0 0
        %435 = vmatprep.subr.bf16.mxu0 0
        %436 = vmatpush1.bf16.msra.mxu0 0
        %437 = vmatprep.mubr.bf16.mxu0 0
        %438 = vmatmul.mubr.bf16.gmra.mrb[0].mxu0 %v403
        %v439 = vpop.f32.mrb[0].mxu0
        %v440 = vadd.f32 0.0, %v439
        %v441 = vpop.f32.mrb[0].mxu0
        %v442 = vpop.f32.mrb[0].mxu0
        %v443 = vpop.f32.mrb[0].mxu0
        %444 = vdwg.mxu0
        %v445 = vmax.f32 %v440, 0.0
        %v446 = vpack.c.bf16 %v445, %v445
        %447 = vmatprep.subr.bf16.mxu0 0
        %448 = vmatpush1.bf16.msra.mxu0 %v330
        %449 = vmatprep.subr.bf16.mxu0 0
        %450 = vmatpush1.bf16.msra.mxu0 %v331
        %451 = vmatprep.subr.bf16.mxu0 0
        %452 = vmatpush1.bf16.msra.mxu0 %v332
        %453 = vmatprep.subr.bf16.mxu0 0
        %454 = vmatpush1.bf16.msra.mxu0 %v333
        %455 = vmatprep.subr.bf16.mxu0 0
        %456 = vmatpush1.bf16.msra.mxu0 %v334
        %457 = vmatprep.subr.bf16.mxu0 0
        %458 = vmatpush1.bf16.msra.mxu0 %v335
        %459 = vmatprep.subr.bf16.mxu0 0
        %460 = vmatpush1.bf16.msra.mxu0 %v336
        %461 = vmatprep.subr.bf16.mxu0 0
        %462 = vmatpush1.bf16.msra.mxu0 %v337
        %463 = vmatprep.subr.bf16.mxu0 0
        %464 = vmatpush1.bf16.msra.mxu0 0
        %465 = vmatprep.subr.bf16.mxu0 0
        %466 = vmatpush1.bf16.msra.mxu0 0
        %467 = vmatprep.subr.bf16.mxu0 0
        %468 = vmatpush1.bf16.msra.mxu0 0
        %469 = vmatprep.subr.bf16.mxu0 0
        %470 = vmatpush1.bf16.msra.mxu0 0
        %471 = vmatprep.subr.bf16.mxu0 0
        %472 = vmatpush1.bf16.msra.mxu0 0
        %473 = vmatprep.subr.bf16.mxu0 0
        %474 = vmatpush1.bf16.msra.mxu0 0
        %475 = vmatprep.subr.bf16.mxu0 0
        %476 = vmatpush1.bf16.msra.mxu0 0
        %477 = vmatprep.subr.bf16.mxu0 0
        %478 = vmatpush1.bf16.msra.mxu0 0
        %479 = vmatprep.mubr.bf16.mxu0 0
        %480 = vmatmul.mubr.bf16.gmra.mrb[0].mxu0 %v446
        %v481 = vpop.f32.mrb[0].mxu0
        %v482 = vadd.f32 0.0, %v481
        %v483 = vpop.f32.mrb[0].mxu0
        %v484 = vpop.f32.mrb[0].mxu0
        %v485 = vpop.f32.mrb[0].mxu0
        %486 = vdwg.mxu0
        %v487 = vpack.c.bf16 %v482, %v482
        %v489 = vsel %vm279, %v339, 0
        %vm491 = vcmask 1043456
        %v493 = vsel %vm491, %v487, 0
        %495 = vmatprep.subr.bf16.mxu0 0
        %496 = vmatpush1.bf16.msra.mxu0 %v493
        %497 = vmatprep.subr.bf16.mxu0 0
        %498 = vmatpush1.bf16.msra.mxu0 0
        %499 = vmatprep.subr.bf16.mxu0 0
        %500 = vmatpush1.bf16.msra.mxu0 0
        %501 = vmatprep.subr.bf16.mxu0 0
        %502 = vmatpush1.bf16.msra.mxu0 0
        %503 = vmatprep.subr.bf16.mxu0 0
        %504 = vmatpush1.bf16.msra.mxu0 0
        %505 = vmatprep.subr.bf16.mxu0 0
        %506 = vmatpush1.bf16.msra.mxu0 0
        %507 = vmatprep.subr.bf16.mxu0 0
        %508 = vmatpush1.bf16.msra.mxu0 0
        %509 = vmatprep.subr.bf16.mxu0 0
        %510 = vmatpush1.bf16.msra.mxu0 0
        %511 = vmatprep.subr.bf16.mxu0 0
        %512 = vmatpush1.bf16.msra.mxu0 0
        %513 = vmatprep.subr.bf16.mxu0 0
        %514 = vmatpush1.bf16.msra.mxu0 0
        %515 = vmatprep.subr.bf16.mxu0 0
        %516 = vmatpush1.bf16.msra.mxu0 0
        %517 = vmatprep.subr.bf16.mxu0 0
        %518 = vmatpush1.bf16.msra.mxu0 0
        %519 = vmatprep.subr.bf16.mxu0 0
        %520 = vmatpush1.bf16.msra.mxu0 0
        %521 = vmatprep.subr.bf16.mxu0 0
        %522 = vmatpush1.bf16.msra.mxu0 0
        %523 = vmatprep.subr.bf16.mxu0 0
        %524 = vmatpush1.bf16.msra.mxu0 0
        %525 = vmatprep.subr.bf16.mxu0 0
        %526 = vmatpush1.bf16.msra.mxu0 0
        %527 = vmatprep.mubr.bf16.mxu0 0
        %528 = vmatmul.mubr.bf16.gmra.mrb[0].mxu0 %v489
        %v529 = vpop.f32.mrb[0].mxu0
        %v530 = vadd.f32 0.0, %v529
        %v531 = vpop.f32.mrb[0].mxu0
        %v532 = vpop.f32.mrb[0].mxu0
        %v533 = vadd.f32 0.0, %v532
        %v534 = vpop.f32.mrb[0].mxu0
        %535 = vdwg.mxu0
        %v536 = vmax.f32 %v530, 0.0
        %v537 = vmax.f32 %v533, 0.0
        %v538 = vpack.c.bf16 %v537, %v536
        %539 = vmatprep.subr.bf16.mxu0 0
        %540 = vmatpush1.bf16.msra.mxu0 %v538
        %541 = vmatprep.subr.bf16.mxu0 0
        %542 = vmatpush1.bf16.msra.mxu0 0
        %543 = vmatprep.subr.bf16.mxu0 0
        %544 = vmatpush1.bf16.msra.mxu0 0
        %545 = vmatprep.subr.bf16.mxu0 0
        %546 = vmatpush1.bf16.msra.mxu0 0
        %547 = vmatprep.subr.bf16.mxu0 0
        %548 = vmatpush1.bf16.msra.mxu0 0
        %549 = vmatprep.subr.bf16.mxu0 0
        %550 = vmatpush1.bf16.msra.mxu0 0
        %551 = vmatprep.subr.bf16.mxu0 0
        %552 = vmatpush1.bf16.msra.mxu0 0
        %553 = vmatprep.subr.bf16.mxu0 0
        %554 = vmatpush1.bf16.msra.mxu0 0
        %555 = vmatprep.subr.bf16.mxu0 0
        %556 = vmatpush1.bf16.msra.mxu0 0
        %557 = vmatprep.subr.bf16.mxu0 0
        %558 = vmatpush1.bf16.msra.mxu0 0
        %559 = vmatprep.subr.bf16.mxu0 0
        %560 = vmatpush1.bf16.msra.mxu0 0
        %561 = vmatprep.subr.bf16.mxu0 0
        %562 = vmatpush1.bf16.msra.mxu0 0
        %563 = vmatprep.subr.bf16.mxu0 0
        %564 = vmatpush1.bf16.msra.mxu0 0
        %565 = vmatprep.subr.bf16.mxu0 0
        %566 = vmatpush1.bf16.msra.mxu0 0
        %567 = vmatprep.subr.bf16.mxu0 0
        %568 = vmatpush1.bf16.msra.mxu0 0
        %569 = vmatprep.subr.bf16.mxu0 0
        %570 = vmatpush1.bf16.msra.mxu0 0
        %571 = vmatprep.mubr.bf16.mxu0 0
        %572 = vmatmul.mubr.bf16.gmra.mrb[0].mxu0 %v358
        %v573 = vpop.f32.mrb[0].mxu0
        %v574 = vadd.f32 0.0, %v573
        %v575 = vpop.f32.mrb[0].mxu0
        %v576 = vpop.f32.mrb[0].mxu0
        %v577 = vpop.f32.mrb[0].mxu0
        %578 = vdwg.mxu0
        %v579 = vmax.f32 %v574, 0.0
        %580 = vst [vmem:[%s236] sm:$0xff] %v536
        %581 = vst [vmem:[%s236 + $0x8] sm:$0xff] %v537
        %582 = vst [vmem:[%s243] sm:$0xff] %v579
        %s583 = sand.u32 %s125, 1
        %s584 = scalar_lea.sflag [#allocation3], %s583
        %s585 = sand.u32 %s125, 1
        %s586 = smul.addr %s585, 16
        %s587 = scalar_lea.vmem [#allocation2], %s586
        %s588 = sand.u32 %s151, 1
        %s589 = scalar_lea.sflag [#allocation5], %s588
        %s590 = sand.u32 %s151, 1
        %s591 = smul.addr %s590, 8
        %s592 = scalar_lea.vmem [#allocation4], %s591
        // Predicated region
        $region37: #{hgat_layer_forward.1} parent=35 // pred_check
          %p593 = pneg %p135
        $region38: #{hgat_layer_forward.1} parent=35 // pred_check_branch
          %595 = sbr.rel (%p593) target = $region40
        $region39: #{hgat_layer_forward.1} parent=35 // pred_region
          %s597 = ssub.s32 256, 256
          %598 = vsyncadd %s584, %s597
          %s599 = smul.addr %s23, 2
          %s600 = smul.addr %s599, 128
          %s601 = scalar_lea.hbm %s4, %s600
          %s602 = sshll.u32 %s587, 4
          %s603 = int_to_ptr.vmem [resolvable:$true] %s602
          %608 = dma.vmem_to_hbm [thread:$0]  %s603, 256, %s601, %s584, 128, 128, 8
        $region40: #{hgat_layer_forward.1} parent=35 // pred_fallthru
          _
        // Predicated region
        $region41: #{hgat_layer_forward.1} parent=35 // pred_check
          %p609 = pneg %p161
        $region42: #{hgat_layer_forward.1} parent=35 // pred_check_branch
          %611 = sbr.rel (%p609) target = $region44
        $region43: #{hgat_layer_forward.1} parent=35 // pred_region
          %s613 = ssub.s32 128, 128
          %614 = vsyncadd %s589, %s613
          %s615 = smul.addr %s23, 128
          %s616 = scalar_lea.hbm %s5, %s615
          %s618 = sshll.u32 %s592, 4
          %s619 = int_to_ptr.vmem [resolvable:$true] %s618
          %621 = dma.vmem_to_hbm [thread:$0]  %s619, 128, %s616, %s589
        $region44: #{hgat_layer_forward.1} parent=35 // pred_fallthru
          _
      $region36: #{hgat_layer_forward.1} parent=5 // pred_fallthru
        _
      %p622 = scmp.le.s32.totalorder 2, %s18
      // Predicated region
      $region45: #{hgat_layer_forward.1} parent=5 // pred_check
        %p623 = pneg %p622
      $region46: #{hgat_layer_forward.1} parent=5 // pred_check_branch
        %625 = sbr.rel (%p623) target = $region48
      $region47: #{hgat_layer_forward.1} parent=5 // pred_region
        %s626 = ssub.s32 %s18, 2
        // Predicated region
        $region49: #{hgat_layer_forward.1} parent=47 // pred_check
          %p627 = pneg %p141
        $region50: #{hgat_layer_forward.1} parent=47 // pred_check_branch
          %629 = sbr.rel (%p627) target = $region52
        $region51: #{hgat_layer_forward.1} parent=47 // pred_region
          %s630 = sand.u32 %s126, 1
          %s631 = scalar_lea.sflag [#allocation3], %s630
          %s632 = sand.u32 %s126, 1
          %s633 = smul.addr %s632, 16
          %s634 = scalar_lea.vmem [#allocation2], %s633
          %635 = dma.done %s631, 256
        $region52: #{hgat_layer_forward.1} parent=47 // pred_fallthru
          _
        // Predicated region
        $region53: #{hgat_layer_forward.1} parent=47 // pred_check
          %p636 = pneg %p167
        $region54: #{hgat_layer_forward.1} parent=47 // pred_check_branch
          %638 = sbr.rel (%p636) target = $region56
        $region55: #{hgat_layer_forward.1} parent=47 // pred_region
          %s639 = sand.u32 %s152, 1
          %s640 = scalar_lea.sflag [#allocation5], %s639
          %s641 = sand.u32 %s152, 1
          %s642 = smul.addr %s641, 8
          %s643 = scalar_lea.vmem [#allocation4], %s642
          %644 = dma.done %s640, 128
        $region56: #{hgat_layer_forward.1} parent=47 // pred_fallthru
          _
      $region48: #{hgat_layer_forward.1} parent=5 // pred_fallthru
        _
    $region6: #{hgat_layer_forward.1} parent=1 // loop_footer
      %s22 = sadd.s32 1, %s18
    $region7: #{hgat_layer_forward.1} parent=1 // loop_footer_branch
      %17 = sbr.rel target = $region3
    $region8: #{hgat_layer_forward.1} parent=1 // loop_exit
      _
    %645 = vsyncpa [#allocation3], 1
    %s646 = scalar_lea.sflag [#allocation3], 1
    %647 = vsyncpa %s646, 1
    %648 = vsyncpa [#allocation5], 1
    %s649 = scalar_lea.sflag [#allocation5], 1
    %650 = vsyncpa %s649, 1

</llo_original>
